<compile_context>
chip_gen: v5e
topology: v5e:2x2
jax: 0.10.0
libtpu: 0.0.40
codegen_flags: <defaults>
</compile_context>

<pallas_src>
import functools

import jax
import jax.numpy as jnp
from jax.experimental import pallas as pl
from jax.experimental.pallas import tpu as pltpu

# RegLoss defaults
K = 5        # number of classes
NC = 2       # number of change points
W_CP = 1.0
W_CLS = 1.0

_LANES = 128


def _regloss_kernel(box_ref, cpgt_ref, y_ref, out_ref, *, L):
    lt = pl.program_id(0)                      # L-tile index
    B, TL = y_ref.shape

    box = box_ref[...].astype(jnp.float32)     # (B, NC + (NC+1)*K)
    cp_gt = cpgt_ref[...].astype(jnp.float32)  # (B, NC)
    y = y_ref[...]                             # (B, TL) int32

    # ---- hoisted per-batch columns (computed once per tile, tiny (B,1) work) ----
    cp = [box[:, j:j + 1] for j in range(NC)]                        # NC x (B,1)
    segv = [[box[:, NC + j * K + c:NC + j * K + c + 1] for c in range(K)]
            for j in range(NC + 1)]                                  # (NC+1) x K x (B,1)
    # per-segment sum_c pred_c^2: a (B,1) constant per segment
    q = [sum(segv[j][c] * segv[j][c] for c in range(K)) for j in range(NC + 1)]

    # ---- change-point regression loss (added once, on the first tile) ----
    cp_pred = box[:, :NC]
    loss_cp = jnp.sum((cp_gt - cp_pred) ** 2)

    # ---- per-point classification SSE via one-hot identity ----
    # global point index / ratio for this tile (handles partial last tile)
    gidx = lt * TL + jax.lax.broadcasted_iota(jnp.int32, (B, TL), 1)   # (B, TL)
    lratio = gidx.astype(jnp.float32) * (1.0 / L)
    valid = jnp.logical_and(gidx < L, y >= 0)
    validf = valid.astype(jnp.float32)

    # TODO(synk): util.transform_pred is not available in the reference source;
    # the YOLO box prediction is expanded piecewise-constantly: point l gets the
    # class scores of segment  s = #{j : l/L >= cp_pred[j]}.
    s = ((lratio >= cp[0]).astype(jnp.int32)
         + (lratio >= cp[1]).astype(jnp.int32))                      # (B, TL)
    m = [(s == j).astype(jnp.float32) for j in range(NC + 1)]        # segment masks

    # sum_c pred_c^2, selected per point from the per-segment constants
    sumsq = m[0] * q[0] + m[1] * q[1] + m[2] * q[2]                  # (B, TL)

    # cross term: prediction at the label class, pred_{seg, y}
    oh = [(y == c).astype(jnp.float32) for c in range(K)]            # one-hot slices
    cross = jnp.zeros((B, TL), jnp.float32)
    for j in range(NC + 1):
        lv_j = sum(oh[c] * segv[j][c] for c in range(K))             # (B, TL)
        cross = cross + m[j] * lv_j

    # per-point error:  sum_c (pred_c - oh_c)^2 = sumsq - 2*cross + 1   (if valid)
    err = (sumsq - 2.0 * cross + 1.0) * validf
    cls_partial = jnp.sum(err)                                       # single fused reduction

    partial = W_CLS * cls_partial + jnp.where(lt == 0, W_CP * loss_cp, 0.0)

    # lane-dense (1,1,128) unmasked store; wrapper reads lane 0 of each tile row.
    out_ref[...] = jnp.zeros((1, 1, _LANES), jnp.float32) + partial


def _choose_tile_l(L, max_tl=512):
    # TL must be a multiple of 128 or equal to L; <=512 keeps the double-
    # buffered y tiles (plus the handful of (B,TL) f32 temporaries) well inside
    # the 32 MiB scoped-VMEM default, which is also safe on v7x's 64 MiB VMEM.
    if L <= 128:
        return L
    return min(max_tl, (L // 128) * 128)


def regloss_sse(box_pred, y, cp_gt):
    """Pallas RegLoss forward (loss_type='sse', transform='yolo_cp')."""
    B, L = y.shape
    TL = _choose_tile_l(L)
    grid_l = pl.cdiv(L, TL)
    box_cols = NC + (NC + 1) * K

    # NOTE: for very long sequences on v5e (lowest HBM BW) the y stream could be
    # passed as int8 (labels fit in [-1, K)) and upcast in-kernel.
    box_pred = box_pred.astype(jnp.float32)
    cp_gt = cp_gt.astype(jnp.float32)
    y = y.astype(jnp.int32)

    kernel = functools.partial(_regloss_kernel, L=L)
    partials = pl.pallas_call(
        kernel,
        out_shape=jax.ShapeDtypeStruct((grid_l, 1, _LANES), jnp.float32),
        grid_spec=pltpu.PrefetchScalarGridSpec(
            num_scalar_prefetch=0,
            grid=(grid_l,),
            in_specs=[
                pl.BlockSpec((B, box_cols), lambda l: (0, 0)),   # box_pred (small, cached)
                pl.BlockSpec((B, NC), lambda l: (0, 0)),         # cp_gt    (small, cached)
                pl.BlockSpec((B, TL), lambda l: (0, l)),         # y        (pipelined)
            ],
            out_specs=pl.BlockSpec((1, 1, _LANES), lambda l: (l, 0, 0)),
        ),
        compiler_params=pltpu.CompilerParams(
            dimension_semantics=("parallel",),
            vmem_limit_bytes=32 * 1024 * 1024,
        ),
    )(box_pred, cp_gt, y)
    # tiny final reduction over per-tile partials
    return jnp.sum(partials[:, 0, 0])


def regloss_sse_ref(box_pred, y, cp_gt):
    """Plain-JAX reference with the same semantics (for a sanity check)."""
    B, L = y.shape
    cp_pred = box_pred[:, :NC]
    loss_cp = jnp.sum((cp_gt - cp_pred) ** 2)
    seg = box_pred[:, NC:].reshape(B, NC + 1, K)
    lratio = (jnp.arange(L, dtype=jnp.float32) / L)[None, :]               # (1, L)
    s = jnp.sum((lratio[:, :, None] >= cp_pred[:, None, :]).astype(jnp.int32),
                axis=-1)                                                   # (B, L)
    y_pred = seg[jnp.arange(B)[:, None], s]                                # (B, L, K)
    mask = (y >= 0)
    y_gt = jax.nn.one_hot(jnp.where(mask, y, 0), K, dtype=jnp.float32)
    err = ((y_pred - y_gt) ** 2) * mask[..., None]
    loss_cls = jnp.sum(err)
    return W_CP * loss_cp + W_CLS * loss_cls


if __name__ == "__main__":
    B, L = 2, 333      # small, but multi-tile: TL=256 -> grid=2, partial last tile
    key = jax.random.PRNGKey(0)
    k1, k2 = jax.random.split(key, 2)

    # labels in [0, K), with some -1 padding to exercise the `y >= 0` masking
    y = jax.random.randint(k1, (B, L), 0, K).astype(jnp.int32)
    y = y.at[1, L - 40:].set(-1)

    # YOLO-style box prediction: [cp ratios | (NC+1) segments x K class scores]
    box_pred = jax.random.uniform(k2, (B, NC + (NC + 1) * K), dtype=jnp.float32)

    # cp_gt supplied explicitly (forward's third arg), bypassing the
    # data-dependent util.find_change_points path; 1.0 == "no change point".
    cp_gt = jnp.array([[0.3, 1.0], [0.25, 0.6]], dtype=jnp.float32)

    loss = jax.block_until_ready(regloss_sse(box_pred, y, cp_gt))
    ref = jax.block_until_ready(regloss_sse_ref(box_pred, y, cp_gt))
    assert jnp.allclose(loss, ref, rtol=1e-5, atol=1e-4), (loss, ref)

    print("KERNEL_OK")
</pallas_src>

<mosaic_0001>
module attributes {stable_mosaic.version = 11 : i64} {
  func.func @_regloss_kernel(%arg0: i32, %arg1: memref<2x17xf32, #tpu.memory_space<vmem>>, %arg2: memref<2x2xf32, #tpu.memory_space<vmem>>, %arg3: memref<2x256xi32, #tpu.memory_space<vmem>>, %arg4: memref<1x1x128xf32, #tpu.memory_space<vmem>>) attributes {dimension_semantics = [#tpu.dimension_semantics<parallel>], iteration_bounds = array<i64: 2>, scalar_prefetch = 0 : i64, scratch_operands = 0 : i64, tpu.core_type = #tpu.core_type<tc>, window_params = [{pipeline_mode = #tpu.pipeline_mode<synchronous>, transform_indices = @transform_0, window_bounds = array<i64: 2, 17>}, {pipeline_mode = #tpu.pipeline_mode<synchronous>, transform_indices = @transform_1, window_bounds = array<i64: 2, 2>}, {transform_indices = @transform_2, window_bounds = array<i64: 2, 256>}, {transform_indices = @transform_3, window_bounds = array<i64: 1, 1, 128>}]} {
    %c0 = arith.constant 0 : index
    %c0_0 = arith.constant 0 : index
    %0 = vector.load %arg1[%c0, %c0_0] : memref<2x17xf32, #tpu.memory_space<vmem>>, vector<2x17xf32>
    %c0_1 = arith.constant 0 : index
    %c0_2 = arith.constant 0 : index
    %1 = vector.load %arg2[%c0_1, %c0_2] : memref<2x2xf32, #tpu.memory_space<vmem>>, vector<2x2xf32>
    %c0_3 = arith.constant 0 : index
    %c0_4 = arith.constant 0 : index
    %2 = vector.load %arg3[%c0_3, %c0_4] : memref<2x256xi32, #tpu.memory_space<vmem>>, vector<2x256xi32>
    %3 = vector.extract_strided_slice %0 {offsets = [0, 0], sizes = [2, 1], strides = [1, 1]} : vector<2x17xf32> to vector<2x1xf32>
    %4 = vector.extract_strided_slice %0 {offsets = [0, 1], sizes = [2, 1], strides = [1, 1]} : vector<2x17xf32> to vector<2x1xf32>
    %5 = vector.extract_strided_slice %0 {offsets = [0, 2], sizes = [2, 1], strides = [1, 1]} : vector<2x17xf32> to vector<2x1xf32>
    %6 = vector.extract_strided_slice %0 {offsets = [0, 3], sizes = [2, 1], strides = [1, 1]} : vector<2x17xf32> to vector<2x1xf32>
    %7 = vector.extract_strided_slice %0 {offsets = [0, 4], sizes = [2, 1], strides = [1, 1]} : vector<2x17xf32> to vector<2x1xf32>
    %8 = vector.extract_strided_slice %0 {offsets = [0, 5], sizes = [2, 1], strides = [1, 1]} : vector<2x17xf32> to vector<2x1xf32>
    %9 = vector.extract_strided_slice %0 {offsets = [0, 6], sizes = [2, 1], strides = [1, 1]} : vector<2x17xf32> to vector<2x1xf32>
    %10 = vector.extract_strided_slice %0 {offsets = [0, 7], sizes = [2, 1], strides = [1, 1]} : vector<2x17xf32> to vector<2x1xf32>
    %11 = vector.extract_strided_slice %0 {offsets = [0, 8], sizes = [2, 1], strides = [1, 1]} : vector<2x17xf32> to vector<2x1xf32>
    %12 = vector.extract_strided_slice %0 {offsets = [0, 9], sizes = [2, 1], strides = [1, 1]} : vector<2x17xf32> to vector<2x1xf32>
    %13 = vector.extract_strided_slice %0 {offsets = [0, 10], sizes = [2, 1], strides = [1, 1]} : vector<2x17xf32> to vector<2x1xf32>
    %14 = vector.extract_strided_slice %0 {offsets = [0, 11], sizes = [2, 1], strides = [1, 1]} : vector<2x17xf32> to vector<2x1xf32>
    %15 = vector.extract_strided_slice %0 {offsets = [0, 12], sizes = [2, 1], strides = [1, 1]} : vector<2x17xf32> to vector<2x1xf32>
    %16 = vector.extract_strided_slice %0 {offsets = [0, 13], sizes = [2, 1], strides = [1, 1]} : vector<2x17xf32> to vector<2x1xf32>
    %17 = vector.extract_strided_slice %0 {offsets = [0, 14], sizes = [2, 1], strides = [1, 1]} : vector<2x17xf32> to vector<2x1xf32>
    %18 = vector.extract_strided_slice %0 {offsets = [0, 15], sizes = [2, 1], strides = [1, 1]} : vector<2x17xf32> to vector<2x1xf32>
    %19 = vector.extract_strided_slice %0 {offsets = [0, 16], sizes = [2, 1], strides = [1, 1]} : vector<2x17xf32> to vector<2x1xf32>
    %20 = arith.mulf %5, %5 : vector<2x1xf32>
    %cst = arith.constant 0.000000e+00 : f32
    %21 = vector.broadcast %cst : f32 to vector<2x1xf32>
    %22 = arith.addf %21, %20 : vector<2x1xf32>
    %23 = arith.mulf %6, %6 : vector<2x1xf32>
    %24 = arith.addf %22, %23 : vector<2x1xf32>
    %25 = arith.mulf %7, %7 : vector<2x1xf32>
    %26 = arith.addf %24, %25 : vector<2x1xf32>
    %27 = arith.mulf %8, %8 : vector<2x1xf32>
    %28 = arith.addf %26, %27 : vector<2x1xf32>
    %29 = arith.mulf %9, %9 : vector<2x1xf32>
    %30 = arith.addf %28, %29 : vector<2x1xf32>
    %31 = arith.mulf %10, %10 : vector<2x1xf32>
    %cst_5 = arith.constant 0.000000e+00 : f32
    %32 = vector.broadcast %cst_5 : f32 to vector<2x1xf32>
    %33 = arith.addf %32, %31 : vector<2x1xf32>
    %34 = arith.mulf %11, %11 : vector<2x1xf32>
    %35 = arith.addf %33, %34 : vector<2x1xf32>
    %36 = arith.mulf %12, %12 : vector<2x1xf32>
    %37 = arith.addf %35, %36 : vector<2x1xf32>
    %38 = arith.mulf %13, %13 : vector<2x1xf32>
    %39 = arith.addf %37, %38 : vector<2x1xf32>
    %40 = arith.mulf %14, %14 : vector<2x1xf32>
    %41 = arith.addf %39, %40 : vector<2x1xf32>
    %42 = arith.mulf %15, %15 : vector<2x1xf32>
    %cst_6 = arith.constant 0.000000e+00 : f32
    %43 = vector.broadcast %cst_6 : f32 to vector<2x1xf32>
    %44 = arith.addf %43, %42 : vector<2x1xf32>
    %45 = arith.mulf %16, %16 : vector<2x1xf32>
    %46 = arith.addf %44, %45 : vector<2x1xf32>
    %47 = arith.mulf %17, %17 : vector<2x1xf32>
    %48 = arith.addf %46, %47 : vector<2x1xf32>
    %49 = arith.mulf %18, %18 : vector<2x1xf32>
    %50 = arith.addf %48, %49 : vector<2x1xf32>
    %51 = arith.mulf %19, %19 : vector<2x1xf32>
    %52 = arith.addf %50, %51 : vector<2x1xf32>
    %53 = vector.extract_strided_slice %0 {offsets = [0, 0], sizes = [2, 2], strides = [1, 1]} : vector<2x17xf32> to vector<2x2xf32>
    %54 = arith.subf %1, %53 : vector<2x2xf32>
    %55 = arith.mulf %54, %54 : vector<2x2xf32>
    %56 = vector.shape_cast %55 : vector<2x2xf32> to vector<1x2x2xf32>
    %cst_7 = arith.constant dense<0.000000e+00> : vector<1xf32>
    %57 = vector.multi_reduction <add>, %56, %cst_7 [1, 2] : vector<1x2x2xf32> to vector<1xf32>
    %58 = vector.shape_cast %57 : vector<1xf32> to vector<1x1x1xf32>
    %59 = vector.extract %58[0, 0, 0] : f32 from vector<1x1x1xf32>
    %c256_i32 = arith.constant 256 : i32
    %60 = arith.muli %arg0, %c256_i32 : i32
    %61 = tpu.iota {dimensions = array<i32: 1>} : vector<2x256xi32>
    %62 = vector.broadcast %60 : i32 to vector<2x256xi32>
    %63 = arith.addi %62, %61 : vector<2x256xi32>
    %64 = arith.sitofp %63 : vector<2x256xi32> to vector<2x256xf32>
    %cst_8 = arith.constant 0.00300300308 : f32
    %65 = vector.broadcast %cst_8 : f32 to vector<2x256xf32>
    %66 = arith.mulf %64, %65 : vector<2x256xf32>
    %c333_i32 = arith.constant 333 : i32
    %67 = vector.broadcast %c333_i32 : i32 to vector<2x256xi32>
    %68 = arith.cmpi slt, %63, %67 : vector<2x256xi32>
    %c0_i32 = arith.constant 0 : i32
    %69 = vector.broadcast %c0_i32 : i32 to vector<2x256xi32>
    %70 = arith.cmpi sge, %2, %69 : vector<2x256xi32>
    %71 = arith.andi %68, %70 : vector<2x256xi1>
    %72 = arith.extui %71 : vector<2x256xi1> to vector<2x256xi32>
    %73 = arith.sitofp %72 : vector<2x256xi32> to vector<2x256xf32>
    %74 = vector.broadcast %3 : vector<2x1xf32> to vector<2x256xf32>
    %75 = arith.cmpf oge, %66, %74 : vector<2x256xf32>
    %76 = arith.extui %75 : vector<2x256xi1> to vector<2x256xi32>
    %77 = vector.broadcast %4 : vector<2x1xf32> to vector<2x256xf32>
    %78 = arith.cmpf oge, %66, %77 : vector<2x256xf32>
    %79 = arith.extui %78 : vector<2x256xi1> to vector<2x256xi32>
    %80 = arith.addi %76, %79 : vector<2x256xi32>
    %c0_i32_9 = arith.constant 0 : i32
    %81 = vector.broadcast %c0_i32_9 : i32 to vector<2x256xi32>
    %82 = arith.cmpi eq, %80, %81 : vector<2x256xi32>
    %83 = arith.extui %82 : vector<2x256xi1> to vector<2x256xi32>
    %84 = arith.sitofp %83 : vector<2x256xi32> to vector<2x256xf32>
    %c1_i32 = arith.constant 1 : i32
    %85 = vector.broadcast %c1_i32 : i32 to vector<2x256xi32>
    %86 = arith.cmpi eq, %80, %85 : vector<2x256xi32>
    %87 = arith.extui %86 : vector<2x256xi1> to vector<2x256xi32>
    %88 = arith.sitofp %87 : vector<2x256xi32> to vector<2x256xf32>
    %c2_i32 = arith.constant 2 : i32
    %89 = vector.broadcast %c2_i32 : i32 to vector<2x256xi32>
    %90 = arith.cmpi eq, %80, %89 : vector<2x256xi32>
    %91 = arith.extui %90 : vector<2x256xi1> to vector<2x256xi32>
    %92 = arith.sitofp %91 : vector<2x256xi32> to vector<2x256xf32>
    %93 = vector.broadcast %30 : vector<2x1xf32> to vector<2x256xf32>
    %94 = arith.mulf %84, %93 : vector<2x256xf32>
    %95 = vector.broadcast %41 : vector<2x1xf32> to vector<2x256xf32>
    %96 = arith.mulf %88, %95 : vector<2x256xf32>
    %97 = arith.addf %94, %96 : vector<2x256xf32>
    %98 = vector.broadcast %52 : vector<2x1xf32> to vector<2x256xf32>
    %99 = arith.mulf %92, %98 : vector<2x256xf32>
    %100 = arith.addf %97, %99 : vector<2x256xf32>
    %c0_i32_10 = arith.constant 0 : i32
    %101 = vector.broadcast %c0_i32_10 : i32 to vector<2x256xi32>
    %102 = arith.cmpi eq, %2, %101 : vector<2x256xi32>
    %103 = arith.extui %102 : vector<2x256xi1> to vector<2x256xi32>
    %104 = arith.sitofp %103 : vector<2x256xi32> to vector<2x256xf32>
    %c1_i32_11 = arith.constant 1 : i32
    %105 = vector.broadcast %c1_i32_11 : i32 to vector<2x256xi32>
    %106 = arith.cmpi eq, %2, %105 : vector<2x256xi32>
    %107 = arith.extui %106 : vector<2x256xi1> to vector<2x256xi32>
    %108 = arith.sitofp %107 : vector<2x256xi32> to vector<2x256xf32>
    %c2_i32_12 = arith.constant 2 : i32
    %109 = vector.broadcast %c2_i32_12 : i32 to vector<2x256xi32>
    %110 = arith.cmpi eq, %2, %109 : vector<2x256xi32>
    %111 = arith.extui %110 : vector<2x256xi1> to vector<2x256xi32>
    %112 = arith.sitofp %111 : vector<2x256xi32> to vector<2x256xf32>
    %c3_i32 = arith.constant 3 : i32
    %113 = vector.broadcast %c3_i32 : i32 to vector<2x256xi32>
    %114 = arith.cmpi eq, %2, %113 : vector<2x256xi32>
    %115 = arith.extui %114 : vector<2x256xi1> to vector<2x256xi32>
    %116 = arith.sitofp %115 : vector<2x256xi32> to vector<2x256xf32>
    %c4_i32 = arith.constant 4 : i32
    %117 = vector.broadcast %c4_i32 : i32 to vector<2x256xi32>
    %118 = arith.cmpi eq, %2, %117 : vector<2x256xi32>
    %119 = arith.extui %118 : vector<2x256xi1> to vector<2x256xi32>
    %120 = arith.sitofp %119 : vector<2x256xi32> to vector<2x256xf32>
    %cst_13 = arith.constant 0.000000e+00 : f32
    %121 = vector.broadcast %cst_13 : f32 to vector<2x256xf32>
    %122 = vector.broadcast %5 : vector<2x1xf32> to vector<2x256xf32>
    %123 = arith.mulf %104, %122 : vector<2x256xf32>
    %cst_14 = arith.constant 0.000000e+00 : f32
    %124 = vector.broadcast %cst_14 : f32 to vector<2x256xf32>
    %125 = arith.addf %124, %123 : vector<2x256xf32>
    %126 = vector.broadcast %6 : vector<2x1xf32> to vector<2x256xf32>
    %127 = arith.mulf %108, %126 : vector<2x256xf32>
    %128 = arith.addf %125, %127 : vector<2x256xf32>
    %129 = vector.broadcast %7 : vector<2x1xf32> to vector<2x256xf32>
    %130 = arith.mulf %112, %129 : vector<2x256xf32>
    %131 = arith.addf %128, %130 : vector<2x256xf32>
    %132 = vector.broadcast %8 : vector<2x1xf32> to vector<2x256xf32>
    %133 = arith.mulf %116, %132 : vector<2x256xf32>
    %134 = arith.addf %131, %133 : vector<2x256xf32>
    %135 = vector.broadcast %9 : vector<2x1xf32> to vector<2x256xf32>
    %136 = arith.mulf %120, %135 : vector<2x256xf32>
    %137 = arith.addf %134, %136 : vector<2x256xf32>
    %138 = arith.mulf %84, %137 : vector<2x256xf32>
    %139 = arith.addf %121, %138 : vector<2x256xf32>
    %140 = vector.broadcast %10 : vector<2x1xf32> to vector<2x256xf32>
    %141 = arith.mulf %104, %140 : vector<2x256xf32>
    %cst_15 = arith.constant 0.000000e+00 : f32
    %142 = vector.broadcast %cst_15 : f32 to vector<2x256xf32>
    %143 = arith.addf %142, %141 : vector<2x256xf32>
    %144 = vector.broadcast %11 : vector<2x1xf32> to vector<2x256xf32>
    %145 = arith.mulf %108, %144 : vector<2x256xf32>
    %146 = arith.addf %143, %145 : vector<2x256xf32>
    %147 = vector.broadcast %12 : vector<2x1xf32> to vector<2x256xf32>
    %148 = arith.mulf %112, %147 : vector<2x256xf32>
    %149 = arith.addf %146, %148 : vector<2x256xf32>
    %150 = vector.broadcast %13 : vector<2x1xf32> to vector<2x256xf32>
    %151 = arith.mulf %116, %150 : vector<2x256xf32>
    %152 = arith.addf %149, %151 : vector<2x256xf32>
    %153 = vector.broadcast %14 : vector<2x1xf32> to vector<2x256xf32>
    %154 = arith.mulf %120, %153 : vector<2x256xf32>
    %155 = arith.addf %152, %154 : vector<2x256xf32>
    %156 = arith.mulf %88, %155 : vector<2x256xf32>
    %157 = arith.addf %139, %156 : vector<2x256xf32>
    %158 = vector.broadcast %15 : vector<2x1xf32> to vector<2x256xf32>
    %159 = arith.mulf %104, %158 : vector<2x256xf32>
    %cst_16 = arith.constant 0.000000e+00 : f32
    %160 = vector.broadcast %cst_16 : f32 to vector<2x256xf32>
    %161 = arith.addf %160, %159 : vector<2x256xf32>
    %162 = vector.broadcast %16 : vector<2x1xf32> to vector<2x256xf32>
    %163 = arith.mulf %108, %162 : vector<2x256xf32>
    %164 = arith.addf %161, %163 : vector<2x256xf32>
    %165 = vector.broadcast %17 : vector<2x1xf32> to vector<2x256xf32>
    %166 = arith.mulf %112, %165 : vector<2x256xf32>
    %167 = arith.addf %164, %166 : vector<2x256xf32>
    %168 = vector.broadcast %18 : vector<2x1xf32> to vector<2x256xf32>
    %169 = arith.mulf %116, %168 : vector<2x256xf32>
    %170 = arith.addf %167, %169 : vector<2x256xf32>
    %171 = vector.broadcast %19 : vector<2x1xf32> to vector<2x256xf32>
    %172 = arith.mulf %120, %171 : vector<2x256xf32>
    %173 = arith.addf %170, %172 : vector<2x256xf32>
    %174 = arith.mulf %92, %173 : vector<2x256xf32>
    %175 = arith.addf %157, %174 : vector<2x256xf32>
    %cst_17 = arith.constant 2.000000e+00 : f32
    %176 = vector.broadcast %cst_17 : f32 to vector<2x256xf32>
    %177 = arith.mulf %176, %175 : vector<2x256xf32>
    %178 = arith.subf %100, %177 : vector<2x256xf32>
    %cst_18 = arith.constant 1.000000e+00 : f32
    %179 = vector.broadcast %cst_18 : f32 to vector<2x256xf32>
    %180 = arith.addf %178, %179 : vector<2x256xf32>
    %181 = arith.mulf %180, %73 : vector<2x256xf32>
    %182 = vector.shape_cast %181 : vector<2x256xf32> to vector<1x2x256xf32>
    %cst_19 = arith.constant dense<0.000000e+00> : vector<1xf32>
    %183 = vector.multi_reduction <add>, %182, %cst_19 [1, 2] : vector<1x2x256xf32> to vector<1xf32>
    %184 = vector.shape_cast %183 : vector<1xf32> to vector<1x1x1xf32>
    %185 = vector.extract %184[0, 0, 0] : f32 from vector<1x1x1xf32>
    %cst_20 = arith.constant 1.000000e+00 : f32
    %186 = arith.mulf %cst_20, %185 : f32
    %c0_i32_21 = arith.constant 0 : i32
    %187 = arith.cmpi eq, %arg0, %c0_i32_21 : i32
    %cst_22 = arith.constant 1.000000e+00 : f32
    %188 = arith.mulf %cst_22, %59 : f32
    %cst_23 = arith.constant 0.000000e+00 : f32
    %189 = arith.select %187, %188, %cst_23 : f32
    %190 = arith.addf %186, %189 : f32
    %cst_24 = arith.constant 0.000000e+00 : f32
    %191 = vector.broadcast %cst_24 : f32 to vector<1x1x128xf32>
    %192 = vector.broadcast %190 : f32 to vector<1x1x128xf32>
    %193 = arith.addf %191, %192 : vector<1x1x128xf32>
    %c0_25 = arith.constant 0 : index
    %c0_26 = arith.constant 0 : index
    %c0_27 = arith.constant 0 : index
    %194 = vector.load %arg4[%c0_25, %c0_26, %c0_27] : memref<1x1x128xf32, #tpu.memory_space<vmem>>, vector<1x1x128xf32>
    tpu.vector_store %arg4[%c0_25, %c0_26, %c0_27], %193 {strides = array<i32>} : memref<1x1x128xf32, #tpu.memory_space<vmem>>, vector<1x1x128xf32>,
    return
  }
  func.func @transform_0(%arg0: i32) -> (i32, i32) {
    %c0_i32 = arith.constant 0 : i32
    %c0_i32_0 = arith.constant 0 : i32
    %c0_i32_1 = arith.constant 0 : i32
    return %c0_i32, %c0_i32_0 : i32, i32
  }
  func.func @transform_1(%arg0: i32) -> (i32, i32) {
    %c0_i32 = arith.constant 0 : i32
    %c0_i32_0 = arith.constant 0 : i32
    %c0_i32_1 = arith.constant 0 : i32
    return %c0_i32, %c0_i32_0 : i32, i32
  }
  func.func @transform_2(%arg0: i32) -> (i32, i32) {
    %c0_i32 = arith.constant 0 : i32
    %c0_i32_0 = arith.constant 0 : i32
    return %c0_i32, %arg0 : i32, i32
  }
  func.func @transform_3(%arg0: i32) -> (i32, i32, i32) {
    %c0_i32 = arith.constant 0 : i32
    %c0_i32_0 = arith.constant 0 : i32
    %c0_i32_1 = arith.constant 0 : i32
    return %arg0, %c0_i32, %c0_i32_0 : i32, i32, i32
  }
}

</mosaic_0001>

<llo_original>
// kernel: tpu_custom_call.1
$region0: #{tpu_custom_call.1}
  #allocation0 [shape = 'u32[]', space=smem, size = 0x4, offset = 0x4, fixed_abs, tag = 'smem constant byte address 0x4 - core index']
  #allocation1 [shape = 'u32[72,128]{1,0:T(1,128)}', space=vmem, size = 0x9000, scoped, tag = 'internal scratch']
  %s0 = inlined_call_operand.hbm [shape: f32[2,17], index: 0, kind: input, shape index: {}]
  %s1 = inlined_call_operand.hbm [shape: f32[2,2], index: 1, kind: input, shape index: {}]
  %s2 = inlined_call_operand.hbm [shape: s32[2,333], index: 2, kind: input, shape index: {}]
  %s3 = inlined_call_operand.hbm [shape: f32[2,1,128], index: 3, kind: output, shape index: {}]
  %s4 = sld [smem:[#allocation0]]
  $region57: #{tpu_custom_call.1} parent=0
    _
  %s6 = ssub.s32 1, %s4
  %s7 = scalar_select 0, %s6, %s4
  $region1: #{tpu_custom_call.1} parent=0
    #allocation2 [shape = 'u8[1024]{0}', space=vmem, size = 0x400, scoped, tag = 'input window, operand 0, single buffered']
    #allocation3 [shape = 's32[2]{0}', space=sflag, size = 0x8, scoped, tag = 'scoped memory for tpu_custom_call.1']
    #allocation4 [shape = 's32[2]{0}', space=sflag, size = 0x8, scoped, tag = 'scoped memory for tpu_custom_call.1']
    #allocation5 [shape = 'u8[1024]{0}', space=vmem, size = 0x400, scoped, tag = 'input window, operand 1, single buffered']
    #allocation6 [shape = 's32[1]{0}', space=sflag, size = 0x4, scoped, tag = 'scoped memory for tpu_custom_call.1']
    #allocation7 [shape = 'u8[4096]{0}', space=vmem, size = 0x1000, scoped, tag = 'input window, operand 2']
    #allocation8 [shape = 'u8[1024]{0}', space=vmem, size = 0x400, scoped, tag = 'output window, operand 0']
    %8 = vsyncpa [#allocation3], 0
    %9 = vsyncpa [#allocation6], 0
    %10 = vsyncpa [#allocation4], 0
    %s11 = scalar_lea.sflag [#allocation4], 1
    %12 = vsyncpa %s11, 0
    loop: start=0, step=1, limit=4
    $region2: #{tpu_custom_call.1} parent=1 // loop_pre_header
      _
    $region3: #{tpu_custom_call.1} parent=1 // loop_header
      %s14 = sphi 0, %s18
      %p15 = scmp.ge.s32.totalorder %s14, 4
      %s22 = sphi 0, %s22
      %s24 = sphi 0, %s22
      %s25 = sphi 0, %s24
      %s39 = sphi 0, %s25
      %s43 = sphi 0, %s43
      %s45 = sphi 0, %s43
      %s46 = sphi 0, %s45
      %s60 = sphi 0, %s46
      %s66 = sphi 0, %s68
      %s69 = sphi 0, %s66
      %s70 = sphi 0, %s69
      %s86 = sphi 0, %s70
      %s92 = sphi 0, %s94
      %s95 = sphi 0, %s92
      %s96 = sphi 0, %s95
      %s112 = sphi 0, %s96
    $region4: #{tpu_custom_call.1} parent=1 // loop_header_branch
      %17 = sbr.rel (%p15) target = $region8
    $region5: #{tpu_custom_call.1} parent=1 // loop_body
      %s19 = ssub.s32 %s14, 1
      %s20 = ssub.s32 %s14, 2
      %s21 = sadd.s32 %s14, 1
      %s23 = sadd.s32 %s22, 1
      %p26 = scmp.eq.s32.totalorder %s14, 1
      %p27 = scmp.ne.s32.totalorder %s22, %s24
      %p28 = scmp.eq.s32.totalorder %s14, 0
      %p29 = por %p27, %p28
      %p30 = scmp.ne.s32.totalorder %s22, %s24
      %p31 = scmp.eq.s32.totalorder %s19, 1
      %p32 = por %p30, %p31
      %p33 = scmp.ne.s32.totalorder %s24, %s25
      %p34 = scmp.eq.s32.totalorder %s19, 0
      %p35 = por %p33, %p34
      %p36 = scmp.ne.s32.totalorder %s24, %s25
      %p37 = scmp.eq.s32.totalorder %s20, 1
      %p38 = por %p36, %p37
      %p40 = scmp.ne.s32.totalorder %s25, %s39
      %p41 = scmp.eq.s32.totalorder %s20, 0
      %p42 = por %p40, %p41
      %s44 = sadd.s32 %s43, 1
      %p47 = scmp.eq.s32.totalorder %s14, 1
      %p48 = scmp.ne.s32.totalorder %s43, %s45
      %p49 = scmp.eq.s32.totalorder %s14, 0
      %p50 = por %p48, %p49
      %p51 = scmp.ne.s32.totalorder %s43, %s45
      %p52 = scmp.eq.s32.totalorder %s19, 1
      %p53 = por %p51, %p52
      %p54 = scmp.ne.s32.totalorder %s45, %s46
      %p55 = scmp.eq.s32.totalorder %s19, 0
      %p56 = por %p54, %p55
      %p57 = scmp.ne.s32.totalorder %s45, %s46
      %p58 = scmp.eq.s32.totalorder %s20, 1
      %p59 = por %p57, %p58
      %p61 = scmp.ne.s32.totalorder %s46, %s60
      %p62 = scmp.eq.s32.totalorder %s20, 0
      %p63 = por %p61, %p62
      %s64 = ssub.s32 %s14, %s21
      %p65 = scmp.eq.s32.totalorder %s64, 0
      %s67 = sadd.s32 %s66, 1
      %s68 = scalar_select %p65, %s66, %s67
      %p71 = pneg %p65
      %p72 = scmp.eq.s32.totalorder %s14, 1
      %p73 = por %p71, %p72
      %p74 = scmp.ne.s32.totalorder %s66, %s69
      %p75 = scmp.eq.s32.totalorder %s14, 0
      %p76 = por %p74, %p75
      %p77 = scmp.ne.s32.totalorder %s66, %s69
      %p78 = scmp.eq.s32.totalorder %s19, 1
      %p79 = por %p77, %p78
      %p80 = scmp.ne.s32.totalorder %s69, %s70
      %p81 = scmp.eq.s32.totalorder %s19, 0
      %p82 = por %p80, %p81
      %p83 = scmp.ne.s32.totalorder %s69, %s70
      %p84 = scmp.eq.s32.totalorder %s20, 1
      %p85 = por %p83, %p84
      %p87 = scmp.ne.s32.totalorder %s70, %s86
      %p88 = scmp.eq.s32.totalorder %s20, 0
      %p89 = por %p87, %p88
      %s90 = ssub.s32 %s14, %s21
      %p91 = scmp.eq.s32.totalorder %s90, 0
      %s93 = sadd.s32 %s92, 1
      %s94 = scalar_select %p91, %s92, %s93
      %p97 = pneg %p91
      %p98 = scmp.eq.s32.totalorder %s14, 1
      %p99 = por %p97, %p98
      %p100 = scmp.ne.s32.totalorder %s92, %s95
      %p101 = scmp.eq.s32.totalorder %s14, 0
      %p102 = por %p100, %p101
      %p103 = scmp.ne.s32.totalorder %s92, %s95
      %p104 = scmp.eq.s32.totalorder %s19, 1
      %p105 = por %p103, %p104
      %p106 = scmp.ne.s32.totalorder %s95, %s96
      %p107 = scmp.eq.s32.totalorder %s19, 0
      %p108 = por %p106, %p107
      %p109 = scmp.ne.s32.totalorder %s95, %s96
      %p110 = scmp.eq.s32.totalorder %s20, 1
      %p111 = por %p109, %p110
      %p113 = scmp.ne.s32.totalorder %s96, %s112
      %p114 = scmp.eq.s32.totalorder %s20, 0
      %p115 = por %p113, %p114
      %p116 = scmp.le.s32.totalorder 1, %s14
      %p117 = scmp.lt.s32.totalorder %s14, 3
      %p118 = pnand %p116, %p117
      %p119 = pneg %p118
      // Predicated region
      $region9: #{tpu_custom_call.1} parent=5 // pred_check
        _
      $region10: #{tpu_custom_call.1} parent=5 // pred_check_branch
        %121 = sbr.rel (%p118) target = $region12
      $region11: #{tpu_custom_call.1} parent=5 // pred_region
        %s122 = ssub.s32 %s14, 1
        // Predicated region
        $region13: #{tpu_custom_call.1} parent=11 // pred_check
          %p123 = pneg %p35
        $region14: #{tpu_custom_call.1} parent=11 // pred_check_branch
          %125 = sbr.rel (%p123) target = $region16
        $region15: #{tpu_custom_call.1} parent=11 // pred_region
          %127 = vsyncadd [#allocation3], 0
          %s129 = sshll.u32 %s0, 4
          %s130 = int_to_ptr.hbm [resolvable:$true] %s129
          %s131 = sshll.u32 [#allocation2], 4
          %s132 = int_to_ptr.vmem [resolvable:$true] %s131
          %134 = dma.hbm_to_vmem [thread:$0]  %s130, 32, %s132, [#allocation3]
        $region16: #{tpu_custom_call.1} parent=11 // pred_fallthru
          _
        // Predicated region
        $region17: #{tpu_custom_call.1} parent=11 // pred_check
          %p135 = pneg %p56
        $region18: #{tpu_custom_call.1} parent=11 // pred_check_branch
          %137 = sbr.rel (%p135) target = $region20
        $region19: #{tpu_custom_call.1} parent=11 // pred_region
          %139 = vsyncadd [#allocation6], 0
          %s141 = sshll.u32 %s1, 4
          %s142 = int_to_ptr.hbm [resolvable:$true] %s141
          %s143 = sshll.u32 [#allocation5], 4
          %s144 = int_to_ptr.vmem [resolvable:$true] %s143
          %146 = dma.hbm_to_vmem [thread:$0]  %s142, 32, %s144, [#allocation6]
        $region20: #{tpu_custom_call.1} parent=11 // pred_fallthru
          _
      $region12: #{tpu_custom_call.1} parent=5 // pred_fallthru
        _
      %p147 = scmp.lt.s32.totalorder %s14, 2
      // Predicated region
      $region21: #{tpu_custom_call.1} parent=5 // pred_check
        %p148 = pneg %p147
      $region22: #{tpu_custom_call.1} parent=5 // pred_check_branch
        %150 = sbr.rel (%p148) target = $region24
      $region23: #{tpu_custom_call.1} parent=5 // pred_region
        // Predicated region
        $region25: #{tpu_custom_call.1} parent=23 // pred_check
          %p151 = pneg %p76
        $region26: #{tpu_custom_call.1} parent=23 // pred_check_branch
          %153 = sbr.rel (%p151) target = $region28
        $region27: #{tpu_custom_call.1} parent=23 // pred_region
          %s154 = sand.u32 %s14, 1
          %s155 = scalar_lea.sflag [#allocation3], %s154
          %s156 = sand.u32 %s66, 1
          %s157 = smul.addr %s156, 4
          %s158 = scalar_lea.vmem [#allocation7], %s157
          %s159 = smul.u32 2, %s14
          %s160 = ssub.s32 3, %s159
          %p161 = scmp.lt.s32.totalorder %s160, 2
          %s162 = scalar_select %p161, %s160, 2
          %s163 = smul.u32 2, %s162
          %s164 = ssub.s32 4, %s163
          %s165 = sshll.u32 %s164, 4
          %166 = vsyncadd %s155, %s165
          %p167 = scmp.ne.s32.totalorder 0, %s163
          %s168 = smul.addr %s159, 2
          %s169 = scalar_lea.hbm %s2, %s168
          %s170 = smul.u32 %s162, 2
          %s171 = sshll.u32 %s170, 4
          %s172 = sshll.u32 %s169, 4
          %s173 = int_to_ptr.hbm [resolvable:$true] %s172
          %s174 = sshll.u32 %s158, 4
          %s175 = int_to_ptr.vmem [resolvable:$true] %s174
          %177 = dma.hbm_to_vmem [thread:$0]  (%p167), %s173, %s171, %s175, %s155
        $region28: #{tpu_custom_call.1} parent=23 // pred_fallthru
          _
      $region24: #{tpu_custom_call.1} parent=5 // pred_fallthru
        _
      %p178 = scmp.le.s32.totalorder 1, %s14
      %p179 = scmp.lt.s32.totalorder %s14, 3
      %p180 = pnand %p178, %p179
      %p181 = pneg %p180
      // Predicated region
      $region29: #{tpu_custom_call.1} parent=5 // pred_check
        _
      $region30: #{tpu_custom_call.1} parent=5 // pred_check_branch
        %183 = sbr.rel (%p180) target = $region32
      $region31: #{tpu_custom_call.1} parent=5 // pred_region
        %s184 = ssub.s32 %s14, 1
        // Predicated region
        $region33: #{tpu_custom_call.1} parent=31 // pred_check
          %p185 = pneg %p35
        $region34: #{tpu_custom_call.1} parent=31 // pred_check_branch
          %187 = sbr.rel (%p185) target = $region36
        $region35: #{tpu_custom_call.1} parent=31 // pred_region
          %189 = dma.done [#allocation3], 32
        $region36: #{tpu_custom_call.1} parent=31 // pred_fallthru
          _
        // Predicated region
        $region37: #{tpu_custom_call.1} parent=31 // pred_check
          %p190 = pneg %p56
        $region38: #{tpu_custom_call.1} parent=31 // pred_check_branch
          %192 = sbr.rel (%p190) target = $region40
        $region39: #{tpu_custom_call.1} parent=31 // pred_region
          %194 = dma.done [#allocation6], 32
        $region40: #{tpu_custom_call.1} parent=31 // pred_fallthru
          _
        %s195 = sand.u32 %s19, 1
        %s196 = scalar_lea.sflag [#allocation3], %s195
        %s197 = sand.u32 %s69, 1
        %s198 = smul.addr %s197, 4
        %s199 = scalar_lea.vmem [#allocation7], %s198
        // Predicated region
        $region41: #{tpu_custom_call.1} parent=31 // pred_check
          %p200 = pneg %p82
        $region42: #{tpu_custom_call.1} parent=31 // pred_check_branch
          %202 = sbr.rel (%p200) target = $region44
        $region43: #{tpu_custom_call.1} parent=31 // pred_region
          %204 = dma.done %s196, 64
        $region44: #{tpu_custom_call.1} parent=31 // pred_fallthru
          _
        %p205 = pneg %p35
        %p206 = pneg %p32
        %p207 = pneg %p56
        %p208 = pneg %p53
        %s209 = sand.u32 %s19, 1
        %s210 = scalar_lea.sflag [#allocation3], %s209
        %s211 = sand.u32 %s69, 1
        %s212 = smul.addr %s211, 4
        %s213 = scalar_lea.vmem [#allocation7], %s212
        %p214 = pneg %p82
        %p215 = pneg %p79
        %p216 = pneg %p108
        %p217 = pneg %p105
        %s218 = sand.u32 %s95, 1
        %s219 = scalar_lea.sflag [#allocation4], %s218
        %s220 = sand.u32 %s95, 1
        %s221 = scalar_lea.vmem [#allocation8], %s220
        %s222 = smul.u32 2, %s19
        %s223 = ssub.s32 3, %s222
        %p224 = scmp.lt.s32.totalorder %s223, 2
        %s225 = scalar_select %p224, %s223, 2
        %s226 = smul.u32 2, %s225
        %v227 = vld [vmem:[#allocation2] sm:$0x3]
        %v228 = vld [vmem:[#allocation5] sm:$0x3]
        %v229 = vld [vmem:[%s199] sm:$0xf]
        %v230 = vmul.f32 %v227, %v227
        %v231 = vadd.f32 %v230, 0.0
        %233 = vrot.lane.b32.xlu0 %v230, 127
        %v234 = vpop.permute.xlu0 %233
        %v236 = vadd.f32 %v231, %v234
        %237 = vrot.lane.b32.xlu0 %v230, 126
        %v238 = vpop.permute.xlu0 %237
        %v240 = vadd.f32 %v236, %v238
        %241 = vrot.lane.b32.xlu0 %v230, 125
        %v242 = vpop.permute.xlu0 %241
        %v244 = vadd.f32 %v240, %v242
        %245 = vrot.lane.b32.xlu0 %v230, 124
        %v246 = vpop.permute.xlu0 %245
        %v248 = vadd.f32 %v244, %v246
        %v249 = vsub.f32 %v228, %v227
        %v250 = vmul.f32 %v249, %v249
        %vm251 = vcmask 9216
        %v252 = vsel %vm251, %v250, 0.0
        %253 = vadd.xlane.f32.xlu0 %v252
        %v254 = vpop.xlane.xlu0 %253
        %v255 = vrot.slane %v254, 4
        %v256 = vadd.f32 %v254, %v255
        %v257 = vrot.slane %v256, 2
        %v258 = vadd.f32 %v256, %v257
        %v259 = vrot.slane %v258, 1
        %v260 = vadd.f32 %v258, %v259
        %s261 = vtos %v260
        %s262 = smul.u32 %s19, 256
        %v263 = vlaneseq
        %v264 = vand.u32 %v263, 127
        %v265 = vadd.s32 %v264, 128
        %v266 = vstv %s262
        %v267 = vadd.s32 %v266, %v264
        %v268 = vadd.s32 %v266, %v265
        %v269 = vcvt.s32.f32 %v267
        %v270 = vcvt.s32.f32 %v268
        %v271 = vmul.f32 %v269, 0.003003003
        %v272 = vmul.f32 %v270, 0.003003003
        %vm273 = vcmp.lt.s32.totalorder %v267, 333
        %vm274 = vcmp.lt.s32.totalorder %v268, 333
        %vm275 = vcmp.ge.s32.totalorder %v229, 0
        %v276 = vsel %vm275, 1, 0
        %277 = vst [vmem:[#allocation1] ss:$4 sm:$0xff] %v276
        %v278 = vld.sshfl [vmem:[#allocation1] sm:$0xff pattern:$0x73625140]
        %v279 = vld.sshfl [vmem:[#allocation1 + $0x8] sm:$0xff pattern:$0x73625140]
        %vm280 = vcmp.ne.s32.totalorder %v278, 0
        %vm281 = vcmp.ne.s32.totalorder %v279, 0
        %vm282 = vmand %vm273, %vm280
        %vm283 = vmand %vm274, %vm281
        %v284 = vsel %vm282, 1, 0
        %v285 = vsel %vm283, 1, 0
        %v286 = vcvt.s32.f32 %v284
        %v287 = vcvt.s32.f32 %v285
        %289 = vset.pattern.permute.xlu0 0
        %290 = vperm.xlu0 %289, %v227
        %v291 = vpop.permute.xlu0 %290
        %vm293 = vcmp.ge.f32.partialorder %v271, %v291
        %vm294 = vcmp.ge.f32.partialorder %v272, %v291
        %v295 = vsel %vm293, 1, 0
        %v296 = vsel %vm294, 1, 0
        %297 = vset.pattern.permute.xlu0 1
        %298 = vperm.xlu0 %297, %v227
        %v299 = vpop.permute.xlu0 %298
        %vm301 = vcmp.ge.f32.partialorder %v271, %v299
        %vm302 = vcmp.ge.f32.partialorder %v272, %v299
        %v303 = vsel %vm301, 1, 0
        %v304 = vsel %vm302, 1, 0
        %v305 = vadd.s32 %v295, %v303
        %v306 = vadd.s32 %v296, %v304
        %vm307 = vcmp.eq.s32.totalorder %v305, 0
        %vm308 = vcmp.eq.s32.totalorder %v306, 0
        %v309 = vsel %vm307, 1, 0
        %v310 = vsel %vm308, 1, 0
        %v311 = vcvt.s32.f32 %v309
        %v312 = vcvt.s32.f32 %v310
        %vm313 = vcmp.eq.s32.totalorder %v305, 1
        %vm314 = vcmp.eq.s32.totalorder %v306, 1
        %v315 = vsel %vm313, 1, 0
        %v316 = vsel %vm314, 1, 0
        %v317 = vcvt.s32.f32 %v315
        %v318 = vcvt.s32.f32 %v316
        %vm319 = vcmp.eq.s32.totalorder %v305, 2
        %vm320 = vcmp.eq.s32.totalorder %v306, 2
        %v321 = vsel %vm319, 1, 0
        %v322 = vsel %vm320, 1, 0
        %v323 = vcvt.s32.f32 %v321
        %v324 = vcvt.s32.f32 %v322
        %326 = vset.pattern.permute.xlu0 2
        %327 = vperm.xlu0 %326, %v248
        %v328 = vpop.permute.xlu0 %327
        %v330 = vmul.f32 %v311, %v328
        %v331 = vmul.f32 %v312, %v328
        %332 = vset.pattern.permute.xlu0 7
        %333 = vperm.xlu0 %332, %v248
        %v334 = vpop.permute.xlu0 %333
        %v336 = vmul.f32 %v317, %v334
        %v337 = vmul.f32 %v318, %v334
        %v338 = vadd.f32 %v330, %v336
        %v339 = vadd.f32 %v331, %v337
        %340 = vset.pattern.permute.xlu0 12
        %341 = vperm.xlu0 %340, %v248
        %v342 = vpop.permute.xlu0 %341
        %v344 = vmul.f32 %v323, %v342
        %v345 = vmul.f32 %v324, %v342
        %v346 = vadd.f32 %v338, %v344
        %v347 = vadd.f32 %v339, %v345
        %vm348 = vcmp.eq.s32.totalorder %v229, 0
        %v349 = vsel %vm348, 1, 0
        %v350 = vcvt.s32.f32 %v349
        %vm351 = vcmp.eq.s32.totalorder %v229, 1
        %v352 = vsel %vm351, 1, 0
        %v353 = vcvt.s32.f32 %v352
        %vm354 = vcmp.eq.s32.totalorder %v229, 2
        %v355 = vsel %vm354, 1, 0
        %v356 = vcvt.s32.f32 %v355
        %vm357 = vcmp.eq.s32.totalorder %v229, 3
        %v358 = vsel %vm357, 1, 0
        %v359 = vcvt.s32.f32 %v358
        %vm360 = vcmp.eq.s32.totalorder %v229, 4
        %v361 = vsel %vm360, 1, 0
        %v362 = vcvt.s32.f32 %v361
        %363 = vset.pattern.permute.xlu0 2
        %364 = vperm.xlu0 %363, %v227
        %v365 = vpop.permute.xlu0 %364
        %v367 = vunpack.c.l.s4 269488144
        %v368 = vunpack.c.0.s8 %v367
        %v369 = vperm.slane %v365, %v368
        %v371 = vmul.f32 %v350, %v369
        %v372 = vadd.f32 %v371, 0.0
        %373 = vset.pattern.permute.xlu0 3
        %374 = vperm.xlu0 %373, %v227
        %v375 = vpop.permute.xlu0 %374
        %v377 = vunpack.c.l.s4 269488144
        %v378 = vunpack.c.0.s8 %v377
        %v379 = vperm.slane %v375, %v378
        %v381 = vmul.f32 %v353, %v379
        %v382 = vadd.f32 %v372, %v381
        %383 = vset.pattern.permute.xlu0 4
        %384 = vperm.xlu0 %383, %v227
        %v385 = vpop.permute.xlu0 %384
        %v387 = vunpack.c.l.s4 269488144
        %v388 = vunpack.c.0.s8 %v387
        %v389 = vperm.slane %v385, %v388
        %v391 = vmul.f32 %v356, %v389
        %v392 = vadd.f32 %v382, %v391
        %393 = vset.pattern.permute.xlu0 5
        %394 = vperm.xlu0 %393, %v227
        %v395 = vpop.permute.xlu0 %394
        %v397 = vunpack.c.l.s4 269488144
        %v398 = vunpack.c.0.s8 %v397
        %v399 = vperm.slane %v395, %v398
        %v401 = vmul.f32 %v359, %v399
        %v402 = vadd.f32 %v392, %v401
        %403 = vset.pattern.permute.xlu0 6
        %404 = vperm.xlu0 %403, %v227
        %v405 = vpop.permute.xlu0 %404
        %v407 = vunpack.c.l.s4 269488144
        %v408 = vunpack.c.0.s8 %v407
        %v409 = vperm.slane %v405, %v408
        %v411 = vmul.f32 %v362, %v409
        %v412 = vadd.f32 %v402, %v411
        %414 = vst [vmem:[#allocation1] ss:$4 sm:$0xff] %v412
        %v415 = vld.sshfl [vmem:[#allocation1] sm:$0xff pattern:$0x73625140]
        %v416 = vld.sshfl [vmem:[#allocation1 + $0x8] sm:$0xff pattern:$0x73625140]
        %v419 = vmul.f32 %v311, %v415
        %v420 = vmul.f32 %v312, %v416
        %v421 = vadd.f32 %v419, 0.0
        %v422 = vadd.f32 %v420, 0.0
        %423 = vset.pattern.permute.xlu0 7
        %424 = vperm.xlu0 %423, %v227
        %v425 = vpop.permute.xlu0 %424
        %v427 = vunpack.c.l.s4 269488144
        %v428 = vunpack.c.0.s8 %v427
        %v429 = vperm.slane %v425, %v428
        %v431 = vmul.f32 %v350, %v429
        %v432 = vadd.f32 %v431, 0.0
        %433 = vset.pattern.permute.xlu0 8
        %434 = vperm.xlu0 %433, %v227
        %v435 = vpop.permute.xlu0 %434
        %v437 = vunpack.c.l.s4 269488144
        %v438 = vunpack.c.0.s8 %v437
        %v439 = vperm.slane %v435, %v438
        %v441 = vmul.f32 %v353, %v439
        %v442 = vadd.f32 %v432, %v441
        %443 = vset.pattern.permute.xlu0 9
        %444 = vperm.xlu0 %443, %v227
        %v445 = vpop.permute.xlu0 %444
        %v447 = vunpack.c.l.s4 269488144
        %v448 = vunpack.c.0.s8 %v447
        %v449 = vperm.slane %v445, %v448
        %v451 = vmul.f32 %v356, %v449
        %v452 = vadd.f32 %v442, %v451
        %453 = vset.pattern.permute.xlu0 10
        %454 = vperm.xlu0 %453, %v227
        %v455 = vpop.permute.xlu0 %454
        %v457 = vunpack.c.l.s4 269488144
        %v458 = vunpack.c.0.s8 %v457
        %v459 = vperm.slane %v455, %v458
        %v461 = vmul.f32 %v359, %v459
        %v462 = vadd.f32 %v452, %v461
        %463 = vset.pattern.permute.xlu0 11
        %464 = vperm.xlu0 %463, %v227
        %v465 = vpop.permute.xlu0 %464
        %v467 = vunpack.c.l.s4 269488144
        %v468 = vunpack.c.0.s8 %v467
        %v469 = vperm.slane %v465, %v468
        %v471 = vmul.f32 %v362, %v469
        %v472 = vadd.f32 %v462, %v471
        %474 = vst [vmem:[#allocation1] ss:$4 sm:$0xff] %v472
        %v475 = vld.sshfl [vmem:[#allocation1] sm:$0xff pattern:$0x73625140]
        %v476 = vld.sshfl [vmem:[#allocation1 + $0x8] sm:$0xff pattern:$0x73625140]
        %v479 = vmul.f32 %v317, %v475
        %v480 = vmul.f32 %v318, %v476
        %v481 = vadd.f32 %v421, %v479
        %v482 = vadd.f32 %v422, %v480
        %483 = vset.pattern.permute.xlu0 12
        %484 = vperm.xlu0 %483, %v227
        %v485 = vpop.permute.xlu0 %484
        %v487 = vunpack.c.l.s4 269488144
        %v488 = vunpack.c.0.s8 %v487
        %v489 = vperm.slane %v485, %v488
        %v491 = vmul.f32 %v350, %v489
        %v492 = vadd.f32 %v491, 0.0
        %493 = vset.pattern.permute.xlu0 13
        %494 = vperm.xlu0 %493, %v227
        %v495 = vpop.permute.xlu0 %494
        %v497 = vunpack.c.l.s4 269488144
        %v498 = vunpack.c.0.s8 %v497
        %v499 = vperm.slane %v495, %v498
        %v501 = vmul.f32 %v353, %v499
        %v502 = vadd.f32 %v492, %v501
        %503 = vset.pattern.permute.xlu0 14
        %504 = vperm.xlu0 %503, %v227
        %v505 = vpop.permute.xlu0 %504
        %v507 = vunpack.c.l.s4 269488144
        %v508 = vunpack.c.0.s8 %v507
        %v509 = vperm.slane %v505, %v508
        %v511 = vmul.f32 %v356, %v509
        %v512 = vadd.f32 %v502, %v511
        %513 = vset.pattern.permute.xlu0 15
        %514 = vperm.xlu0 %513, %v227
        %v515 = vpop.permute.xlu0 %514
        %v517 = vunpack.c.l.s4 269488144
        %v518 = vunpack.c.0.s8 %v517
        %v519 = vperm.slane %v515, %v518
        %v521 = vmul.f32 %v359, %v519
        %v522 = vadd.f32 %v512, %v521
        %523 = vset.pattern.permute.xlu0 16
        %524 = vperm.xlu0 %523, %v227
        %v525 = vpop.permute.xlu0 %524
        %v527 = vunpack.c.l.s4 269488144
        %v528 = vunpack.c.0.s8 %v527
        %v529 = vperm.slane %v525, %v528
        %v531 = vmul.f32 %v362, %v529
        %v532 = vadd.f32 %v522, %v531
        %534 = vst [vmem:[#allocation1] ss:$4 sm:$0xff] %v532
        %v535 = vld.sshfl [vmem:[#allocation1] sm:$0xff pattern:$0x73625140]
        %v536 = vld.sshfl [vmem:[#allocation1 + $0x8] sm:$0xff pattern:$0x73625140]
        %v539 = vmul.f32 %v323, %v535
        %v540 = vmul.f32 %v324, %v536
        %v541 = vadd.f32 %v481, %v539
        %v542 = vadd.f32 %v482, %v540
        %v543 = vmul.f32 %v541, 2.0
        %v544 = vmul.f32 %v542, 2.0
        %v545 = vsub.f32 %v346, %v543
        %v546 = vsub.f32 %v347, %v544
        %v547 = vadd.f32 %v545, 1.0
        %v548 = vadd.f32 %v546, 1.0
        %v549 = vmul.f32 %v547, %v286
        %v550 = vmul.f32 %v548, %v287
        %vm551 = vcmask 1041408
        %v552 = vsel %vm551, %v549, 0.0
        %v553 = vsel %vm551, %v550, 0.0
        %v554 = vadd.f32 %v552, %v553
        %555 = vadd.xlane.f32.xlu0 %v554
        %v556 = vpop.xlane.xlu0 %555
        %v557 = vrot.slane %v556, 4
        %v558 = vadd.f32 %v556, %v557
        %v559 = vrot.slane %v558, 2
        %v560 = vadd.f32 %v558, %v559
        %v561 = vrot.slane %v560, 1
        %v562 = vadd.f32 %v560, %v561
        %s563 = vtos %v562
        %p564 = scmp.eq.s32.totalorder %s19, 0
        %s565 = scalar_select %p564, %s261, 0.0
        %s566 = sadd.f32 %s563, %s565
        %v567 = vstv %s566
        %v568 = vadd.f32 %v567, 0.0
        %569 = vst [vmem:[%s221] sm:$0x1] %v568
        %s570 = sand.u32 %s95, 1
        %s571 = scalar_lea.sflag [#allocation4], %s570
        %s572 = sand.u32 %s95, 1
        %s573 = scalar_lea.vmem [#allocation8], %s572
        // Predicated region
        $region45: #{tpu_custom_call.1} parent=31 // pred_check
          %p574 = pneg %p105
        $region46: #{tpu_custom_call.1} parent=31 // pred_check_branch
          %576 = sbr.rel (%p574) target = $region48
        $region47: #{tpu_custom_call.1} parent=31 // pred_region
          %578 = vsyncadd %s571, 0
          %s579 = scalar_lea.hbm %s3, %s19
          %s581 = sshll.u32 %s573, 4
          %s582 = int_to_ptr.vmem [resolvable:$true] %s581
          %s583 = sshll.u32 %s579, 4
          %s584 = int_to_ptr.hbm [resolvable:$true] %s583
          %586 = dma.vmem_to_hbm [thread:$0]  %s582, 16, %s584, %s571
        $region48: #{tpu_custom_call.1} parent=31 // pred_fallthru
          _
      $region32: #{tpu_custom_call.1} parent=5 // pred_fallthru
        _
      %p587 = scmp.le.s32.totalorder 2, %s14
      // Predicated region
      $region49: #{tpu_custom_call.1} parent=5 // pred_check
        %p588 = pneg %p587
      $region50: #{tpu_custom_call.1} parent=5 // pred_check_branch
        %590 = sbr.rel (%p588) target = $region52
      $region51: #{tpu_custom_call.1} parent=5 // pred_region
        %s591 = ssub.s32 %s14, 2
        // Predicated region
        $region53: #{tpu_custom_call.1} parent=51 // pred_check
          %p592 = pneg %p111
        $region54: #{tpu_custom_call.1} parent=51 // pred_check_branch
          %594 = sbr.rel (%p592) target = $region56
        $region55: #{tpu_custom_call.1} parent=51 // pred_region
          %s595 = sand.u32 %s96, 1
          %s596 = scalar_lea.sflag [#allocation4], %s595
          %s597 = sand.u32 %s96, 1
          %s598 = scalar_lea.vmem [#allocation8], %s597
          %600 = dma.done %s596, 16
        $region56: #{tpu_custom_call.1} parent=51 // pred_fallthru
          _
      $region52: #{tpu_custom_call.1} parent=5 // pred_fallthru
        _
    $region6: #{tpu_custom_call.1} parent=1 // loop_footer
      %s18 = sadd.s32 1, %s14
    $region7: #{tpu_custom_call.1} parent=1 // loop_footer_branch
      %13 = sbr.rel target = $region3
    $region8: #{tpu_custom_call.1} parent=1 // loop_exit
      _
    %601 = vsyncpa [#allocation3], 1
    %s602 = scalar_lea.sflag [#allocation3], 1
    %603 = vsyncpa %s602, 1
    %604 = vsyncpa [#allocation6], 1
    %605 = vsyncpa [#allocation4], 1
    %s606 = scalar_lea.sflag [#allocation4], 1
    %607 = vsyncpa %s606, 1

</llo_original>
